<compile_context>
chip_gen: v5e
topology: v5e:2x2
jax: 0.10.0
libtpu: 0.0.40
codegen_flags: <defaults>
</compile_context>

<pallas_src>
import functools

import jax
import jax.numpy as jnp
from jax.experimental import pallas as pl
from jax.experimental.pallas import tpu as pltpu


def _round_up(x, m):
    return ((x + m - 1) // m) * m


def _pad2(a, rows, cols):
    return jnp.pad(a, ((0, rows - a.shape[0]), (0, cols - a.shape[1])))


def _device_kind():
    try:
        return jax.devices()[0].device_kind.lower()
    except Exception:
        return ""


def _vmem_capacity_bytes():
    try:
        return int(pltpu.get_tpu_info().vmem_capacity_bytes)
    except Exception:
        return 64 * 1024 * 1024  # conservative fallback (v7x physical size)


def _pick_block_i(n_nodes, n_par, hp, rp, vmem_budget):
    """Largest multiple-of-8 divisor of N whose i-blocks split evenly across
    `n_par` cores while M = block_i*N stays in the MXU-friendly ~2K-row range
    and the per-step working set (~M*(h_f32 + h_bf16 + r_f32)) fits VMEM."""
    bytes_per_row = 4 * hp + 2 * hp + 4 * rp
    row_cap = max(vmem_budget // bytes_per_row, 8)
    target_rows = min(2048, row_cap)
    best = 8
    for cand in range(8, n_nodes + 1, 8):
        if n_nodes % cand:
            continue
        if (n_nodes // cand) % n_par:
            continue
        if cand * n_nodes <= max(target_rows, 8 * n_nodes):
            best = cand
    return best


def _relation_body(x_ref, w1_ref, b1_ref, w2_ref, b2_ref, a_sc, b_sc, acc_sc,
                   *, n_nodes, block_i, hp, elem_dtype, has_par_axis):
    """Shared per-step body: factored first Linear at step 0 + one block of
    `block_i` i-nodes against all j-nodes, partial-summed into acc_sc."""
    if has_par_axis:
        c = pl.program_id(0)
        s = pl.program_id(1)
        n_steps = pl.num_programs(1)
    else:
        c = 0
        s = pl.program_id(0)
        n_steps = pl.num_programs(0)

    @pl.when(s == 0)
    def _():
        # Fused A|B = x @ [W1a | W1b] (+ b1 on the A half): one MXU weight
        # push, kept in f32 for accuracy, stored in elem_dtype (bf16 on
        # v6e/v7x, f32 on v5e where the VPU has no bf16 ALUs).
        ab = (jnp.dot(x_ref[...], w1_ref[...], preferred_element_type=jnp.float32)
              + b1_ref[...])
        a_sc[...] = ab[:, :hp].astype(elem_dtype)
        b_sc[...] = ab[:, hp:].astype(elem_dtype)
        acc_sc[...] = jnp.zeros_like(acc_sc)

    # This step: all pairs (i, j) for one block of `block_i` i-nodes, all j.
    i0 = pl.multiple_of((c * n_steps + s) * block_i, block_i)
    a_blk = a_sc[pl.ds(i0, block_i), :]                    # (BI, Hp)
    b_all = b_sc[...]                                      # (N,  Hp)

    # h[ii, j, :] = relu(A[i0+ii] + B[j]); the reshape only merges the two
    # leading (sublane-major) dims (N % 8 == 0), so it is a layout relabeling.
    h = jnp.maximum(a_blk[:, None, :] + b_all[None, :, :], 0.0)
    h2 = h.reshape(block_i * n_nodes, hp).astype(jnp.bfloat16)

    r = jnp.dot(h2, w2_ref[...], preferred_element_type=jnp.float32) + b2_ref[...]
    r = jnp.maximum(r, 0.0)                                # (BI*N, Rp)
    acc_sc[...] += jnp.sum(r, axis=0, keepdims=True)       # partial pair-sum

    return s, n_steps


def _relnet_fused_kernel(x_ref, w1_ref, b1_ref, w2_ref, b2_ref,
                         w3_ref, b3_ref, w4_ref, b4_ref, out_ref,
                         a_sc, b_sc, acc_sc,
                         *, n_nodes, block_i, hp, inv_pairs, elem_dtype):
    s, n_steps = _relation_body(
        x_ref, w1_ref, b1_ref, w2_ref, b2_ref, a_sc, b_sc, acc_sc,
        n_nodes=n_nodes, block_i=block_i, hp=hp, elem_dtype=elem_dtype,
        has_par_axis=False)

    @pl.when(s == n_steps - 1)
    def _():
        R = acc_sc[...] * inv_pairs                        # mean over N^2 pairs
        o = jnp.maximum(
            jnp.dot(R, w3_ref[...], preferred_element_type=jnp.float32)
            + b3_ref[...], 0.0)
        out_ref[...] = (
            jnp.dot(o, w4_ref[...], preferred_element_type=jnp.float32)
            + b4_ref[...])


def _relnet_partial_kernel(x_ref, w1_ref, b1_ref, w2_ref, b2_ref, out_ref,
                           a_sc, b_sc, acc_sc,
                           *, n_nodes, block_i, hp, elem_dtype):
    s, n_steps = _relation_body(
        x_ref, w1_ref, b1_ref, w2_ref, b2_ref, a_sc, b_sc, acc_sc,
        n_nodes=n_nodes, block_i=block_i, hp=hp, elem_dtype=elem_dtype,
        has_par_axis=True)

    @pl.when(s == n_steps - 1)
    def _():
        # Replicate the (1, Rp) per-core partial across 8 sublane rows so the
        # output block stays (8, 128)-tile aligned; finalize undoes the 8x.
        out_ref[...] = jnp.broadcast_to(acc_sc[...], (8, acc_sc.shape[-1]))


def _finalize_kernel(part_ref, w3_ref, b3_ref, w4_ref, b4_ref, out_ref,
                     *, inv_pairs):
    # Each core's partial sum is 8x-replicated across sublanes, hence the 1/8.
    R = jnp.sum(part_ref[...], axis=0, keepdims=True) * (inv_pairs / 8.0)
    o = jnp.maximum(
        jnp.dot(R, w3_ref[...], preferred_element_type=jnp.float32) + b3_ref[...],
        0.0)
    out_ref[...] = (
        jnp.dot(o, w4_ref[...], preferred_element_type=jnp.float32) + b4_ref[...])


def relnet_forward(node_feats, params, *, block_i=None, num_cores=None):
    """node_feats: (N, input_dim) float32.  Returns (output_dim,) float32."""
    w1, b1, w2, b2, w3, b3, w4, b4 = params
    N, D = node_feats.shape
    assert N % 8 == 0, "N must be a multiple of 8 (sublane alignment)"
    assert w1.shape[0] == 2 * D
    # TODO(synk): support ragged/padded N by masking padded i/j rows before the
    # pair sum (padded rows would otherwise contribute relu(bias) terms).

    H, Rdim, O1, OD = w1.shape[1], w2.shape[1], w3.shape[1], w4.shape[1]
    Dp, Hp, Rp, O1p, Op = (_round_up(d, 128) for d in (D, H, Rdim, O1, OD))

    kind = _device_kind()
    # bf16 elementwise (A/B scratch + h) only where the VPU has bf16 ALUs.
    use_bf16_elem = not any(g in kind for g in ("v2", "v3", "v4", "v5"))
    elem_dtype = jnp.bfloat16 if use_bf16_elem else jnp.float32

    vmem_cap = _vmem_capacity_bytes()
    vmem_limit = int(min(vmem_cap // 2, 96 * 1024 * 1024))  # ~64MiB v5e/v6e, ~32MiB v7x

    if num_cores is None:
        num_cores = 2 if ("v7" in kind or "tpu7" in kind) else 1   # v7x: 2 TCs/chip
    n_par = num_cores if (num_cores > 1 and (N // 8) % num_cores == 0) else 1

    if block_i is None:
        block_i = _pick_block_i(N, n_par, Hp, Rp, vmem_budget=vmem_limit // 3)
    assert block_i % 8 == 0 and N % block_i == 0, \
        "block_i must be a multiple-of-8 divisor of N"
    n_blocks = N // block_i
    assert n_blocks % n_par == 0
    n_steps = n_blocks // n_par
    inv_pairs = 1.0 / float(N * N)

    # Lane-dense zero padding.  W1 is fused into one (Dp, 2*Hp) weight so step
    # 0 is a single MXU weight push; the bias lives only on the A half.
    xp = _pad2(node_feats.astype(jnp.float32), N, Dp)
    w1f = jnp.concatenate([_pad2(w1[:D], Dp, Hp), _pad2(w1[D:], Dp, Hp)], axis=1)
    b1f = jnp.concatenate([_pad2(b1, 1, Hp), jnp.zeros((1, Hp), jnp.float32)], axis=1)
    w2p = _pad2(w2, Hp, Rp).astype(jnp.bfloat16)
    b2p = _pad2(b2, 1, Rp)
    w3p = _pad2(w3, Rp, O1p)
    b3p = _pad2(b3, 1, O1p)
    w4p = _pad2(w4, O1p, Op)
    b4p = _pad2(b4, 1, Op)

    scratch = [pltpu.VMEM((N, Hp), elem_dtype),    # A = x @ W1[:D] + b1
               pltpu.VMEM((N, Hp), elem_dtype),    # B = x @ W1[D:]
               pltpu.VMEM((1, Rp), jnp.float32)]   # running pair-sum

    flops = ((2 * N * Dp * (2 * Hp)) * n_par          # factored first Linear
             + 2 * N * N * Hp * Rp                    # relation Linear, all pairs
             + 2 * (Rp * O1p + O1p * Op))             # output_model (once)
    bytes_accessed = (4 * (xp.size + w1f.size + b1f.size + b2p.size + w3p.size
                           + b3p.size + w4p.size + b4p.size + Op)
                      + 2 * w2p.size)
    cost = pl.CostEstimate(flops=int(flops), transcendentals=0,
                           bytes_accessed=int(bytes_accessed))

    if n_par == 1:
        # Single TensorCore: mean + output_model fused into the same kernel.
        const = lambda i: (0, 0)
        # Constant block index -> DMA'd exactly once; single-buffer them.
        spec = lambda shape: pl.BlockSpec(shape, const,
                                          pipeline_mode=pl.Buffered(1))
        kern = functools.partial(
            _relnet_fused_kernel, n_nodes=N, block_i=block_i, hp=Hp,
            inv_pairs=inv_pairs, elem_dtype=elem_dtype)
        out = pl.pallas_call(
            kern,
            out_shape=jax.ShapeDtypeStruct((1, Op), jnp.float32),
            grid_spec=pltpu.PrefetchScalarGridSpec(
                num_scalar_prefetch=0,
                grid=(n_steps,),
                in_specs=[spec((N, Dp)), spec((Dp, 2 * Hp)), spec((1, 2 * Hp)),
                          spec((Hp, Rp)), spec((1, Rp)),
                          spec((Rp, O1p)), spec((1, O1p)),
                          spec((O1p, Op)), spec((1, Op))],
                out_specs=pl.BlockSpec((1, Op), const),
                scratch_shapes=scratch),
            compiler_params=pltpu.CompilerParams(
                dimension_semantics=("arbitrary",),
                vmem_limit_bytes=vmem_limit),
            cost_estimate=cost,
        )(xp, w1f, b1f, w2p, b2p, w3p, b3p, w4p, b4p)
        return out[0, :OD]

    # >= 2 TensorCores (v7x): split i-blocks across cores with a leading
    # "parallel" grid axis; each core writes its partial relation sum and a
    # trivial second call does the mean + output_model.
    const2 = lambda c, s: (0, 0)
    spec2 = lambda shape: pl.BlockSpec(shape, const2,
                                       pipeline_mode=pl.Buffered(1))
    kern = functools.partial(
        _relnet_partial_kernel, n_nodes=N, block_i=block_i, hp=Hp,
        elem_dtype=elem_dtype)
    partial_sums = pl.pallas_call(
        kern,
        out_shape=jax.ShapeDtypeStruct((n_par * 8, Rp), jnp.float32),
        grid_spec=pltpu.PrefetchScalarGridSpec(
            num_scalar_prefetch=0,
            grid=(n_par, n_steps),
            in_specs=[spec2((N, Dp)), spec2((Dp, 2 * Hp)), spec2((1, 2 * Hp)),
                      spec2((Hp, Rp)), spec2((1, Rp))],
            out_specs=pl.BlockSpec((8, Rp), lambda c, s: (c, 0)),
            scratch_shapes=scratch),
        compiler_params=pltpu.CompilerParams(
            dimension_semantics=("parallel", "arbitrary"),
            vmem_limit_bytes=vmem_limit),
        cost_estimate=cost,
    )(xp, w1f, b1f, w2p, b2p)

    c1 = lambda i: (0, 0)
    fin = functools.partial(_finalize_kernel, inv_pairs=inv_pairs)
    out = pl.pallas_call(
        fin,
        out_shape=jax.ShapeDtypeStruct((1, Op), jnp.float32),
        grid_spec=pltpu.PrefetchScalarGridSpec(
            num_scalar_prefetch=0,
            grid=(1,),
            in_specs=[pl.BlockSpec((n_par * 8, Rp), c1),
                      pl.BlockSpec((Rp, O1p), c1), pl.BlockSpec((1, O1p), c1),
                      pl.BlockSpec((O1p, Op), c1), pl.BlockSpec((1, Op), c1)],
            out_specs=pl.BlockSpec((1, Op), c1)),
        compiler_params=pltpu.CompilerParams(
            dimension_semantics=("arbitrary",)),
    )(partial_sums, w3p, b3p, w4p, b4p)
    return out[0, :OD]


def init_params(key, input_dim, hidden_dim, relation_dim, output_dim):
    """Deterministic PyTorch-default-style uniform init, weights as (in, out)."""
    def linear(k, fan_in, fan_out):
        k_w, k_b = jax.random.split(k)
        bound = 1.0 / jnp.sqrt(float(fan_in))
        w = jax.random.uniform(k_w, (fan_in, fan_out), jnp.float32, -bound, bound)
        b = jax.random.uniform(k_b, (1, fan_out), jnp.float32, -bound, bound)
        return w, b

    k1, k2, k3, k4 = jax.random.split(key, 4)
    w1, b1 = linear(k1, 2 * input_dim, hidden_dim)
    w2, b2 = linear(k2, hidden_dim, relation_dim)
    w3, b3 = linear(k3, relation_dim, 64)
    w4, b4 = linear(k4, 64, output_dim)
    return (w1, b1, w2, b2, w3, b3, w4, b4)


def relnet_reference(node_feats, params):
    """Pure-JAX f32 reference matching the PyTorch double-loop semantics."""
    w1, b1, w2, b2, w3, b3, w4, b4 = params
    N = node_feats.shape[0]
    left = jnp.repeat(node_feats, N, axis=0)          # node i
    right = jnp.tile(node_feats, (N, 1))              # node j
    pairs = jnp.concatenate([left, right], axis=1)    # (N*N, 2*D)
    h = jnp.maximum(pairs @ w1 + b1, 0.0)
    r = jnp.maximum(h @ w2 + b2, 0.0)
    R = r.mean(axis=0, keepdims=True)
    o = jnp.maximum(R @ w3 + b3, 0.0)
    return (o @ w4 + b4)[0]


if __name__ == "__main__":
    # Small shapes consistent with the module's forward (N x N node pairs).
    N = 16
    input_dim = 16
    hidden_dim = 32
    relation_dim = 32
    output_dim = 8

    key = jax.random.PRNGKey(0)
    k_params, k_x1, k_x2 = jax.random.split(key, 3)
    params = init_params(k_params, input_dim, hidden_dim, relation_dim, output_dim)

    # Test 1: demo shapes, auto tiling (single grid step on 1-TC chips; splits
    # across the two TensorCores automatically on v7x).
    node_feats = jax.random.normal(k_x1, (N, input_dim), jnp.float32)
    out = jax.block_until_ready(relnet_forward(node_feats, params))
    ref = relnet_reference(node_feats, params)
    assert out.shape == (output_dim,)
    # x / A / B stay f32; only h and W2 are bf16 on the MXU -> tight tolerance.
    assert jnp.allclose(out, ref, atol=2e-2, rtol=2e-2), (out, ref)

    # Test 2: exercise the multi-step accumulation + per-core partial-sum path
    # (forced 2-way i-block split; correct on any chip, truly parallel on v7x).
    N2 = 32
    node_feats2 = jax.random.normal(k_x2, (N2, input_dim), jnp.float32)
    out2 = jax.block_until_ready(
        relnet_forward(node_feats2, params, block_i=8, num_cores=2))
    ref2 = relnet_reference(node_feats2, params)
    assert jnp.allclose(out2, ref2, atol=2e-2, rtol=2e-2), (out2, ref2)

    print("KERNEL_OK")
</pallas_src>

<mosaic_0001>
module attributes {stable_mosaic.version = 11 : i64} {
  func.func @_relnet_fused_kernel(%arg0: i32, %arg1: memref<16x128xf32, #tpu.memory_space<vmem>>, %arg2: memref<128x256xf32, #tpu.memory_space<vmem>>, %arg3: memref<1x256xf32, #tpu.memory_space<vmem>>, %arg4: memref<128x128xbf16, #tpu.memory_space<vmem>>, %arg5: memref<1x128xf32, #tpu.memory_space<vmem>>, %arg6: memref<128x128xf32, #tpu.memory_space<vmem>>, %arg7: memref<1x128xf32, #tpu.memory_space<vmem>>, %arg8: memref<128x128xf32, #tpu.memory_space<vmem>>, %arg9: memref<1x128xf32, #tpu.memory_space<vmem>>, %arg10: memref<1x128xf32, #tpu.memory_space<vmem>>, %arg11: memref<16x128xbf16, #tpu.memory_space<vmem>>, %arg12: memref<16x128xbf16, #tpu.memory_space<vmem>>, %arg13: memref<1x128xf32, #tpu.memory_space<vmem>>) attributes {dimension_semantics = [#tpu.dimension_semantics<arbitrary>], iteration_bounds = array<i64: 1>, scalar_prefetch = 0 : i64, scratch_operands = 3 : i64, tpu.core_type = #tpu.core_type<tc>, window_params = [{pipeline_mode = #tpu.pipeline_mode<synchronous>, transform_indices = @transform_0, window_bounds = array<i64: 16, 128>}, {pipeline_mode = #tpu.pipeline_mode<synchronous>, transform_indices = @transform_1, window_bounds = array<i64: 128, 256>}, {pipeline_mode = #tpu.pipeline_mode<synchronous>, transform_indices = @transform_2, window_bounds = array<i64: 1, 256>}, {pipeline_mode = #tpu.pipeline_mode<synchronous>, transform_indices = @transform_3, window_bounds = array<i64: 128, 128>}, {pipeline_mode = #tpu.pipeline_mode<synchronous>, transform_indices = @transform_4, window_bounds = array<i64: 1, 128>}, {pipeline_mode = #tpu.pipeline_mode<synchronous>, transform_indices = @transform_5, window_bounds = array<i64: 128, 128>}, {pipeline_mode = #tpu.pipeline_mode<synchronous>, transform_indices = @transform_6, window_bounds = array<i64: 1, 128>}, {pipeline_mode = #tpu.pipeline_mode<synchronous>, transform_indices = @transform_7, window_bounds = array<i64: 128, 128>}, {pipeline_mode = #tpu.pipeline_mode<synchronous>, transform_indices = @transform_8, window_bounds = array<i64: 1, 128>}, {pipeline_mode = #tpu.pipeline_mode<synchronous>, transform_indices = @transform_9, window_bounds = array<i64: 1, 128>}]} {
    %c0_i32 = arith.constant 0 : i32
    %0 = arith.cmpi eq, %arg0, %c0_i32 : i32
    %1 = arith.extui %0 : i1 to i32
    %c0_i32_0 = arith.constant 0 : i32
    %2 = arith.cmpi ne, %1, %c0_i32_0 : i32
    scf.if %2 {
      %c0_17 = arith.constant 0 : index
      %c0_18 = arith.constant 0 : index
      %32 = vector.load %arg1[%c0_17, %c0_18] : memref<16x128xf32, #tpu.memory_space<vmem>>, vector<16x128xf32>
      %c0_19 = arith.constant 0 : index
      %c0_20 = arith.constant 0 : index
      %33 = vector.load %arg2[%c0_19, %c0_20] : memref<128x256xf32, #tpu.memory_space<vmem>>, vector<128x256xf32>
      %cst_21 = arith.constant dense<0.000000e+00> : vector<16x256xf32>
      %34 = tpu.matmul %32, %33, %cst_21 {dimension_numbers = #tpu.dot_dimension_numbers<[1], [0], [0], [1], [0, 0, 1, 1], [], []>} : vector<16x128xf32>, vector<128x256xf32>, vector<16x256xf32> -> vector<16x256xf32>
      %c0_22 = arith.constant 0 : index
      %c0_23 = arith.constant 0 : index
      %35 = vector.load %arg3[%c0_22, %c0_23] : memref<1x256xf32, #tpu.memory_space<vmem>>, vector<1x256xf32>
      %36 = vector.broadcast %35 : vector<1x256xf32> to vector<16x256xf32>
      %37 = arith.addf %34, %36 : vector<16x256xf32>
      %38 = vector.extract_strided_slice %37 {offsets = [0, 0], sizes = [16, 128], strides = [1, 1]} : vector<16x256xf32> to vector<16x128xf32>
      %39 = arith.truncf %38 : vector<16x128xf32> to vector<16x128xbf16>
      %c0_24 = arith.constant 0 : index
      %c0_25 = arith.constant 0 : index
      %40 = vector.load %arg11[%c0_24, %c0_25] : memref<16x128xbf16, #tpu.memory_space<vmem>>, vector<16x128xbf16>
      tpu.vector_store %arg11[%c0_24, %c0_25], %39 {strides = array<i32>} : memref<16x128xbf16, #tpu.memory_space<vmem>>, vector<16x128xbf16>,
      %41 = vector.extract_strided_slice %37 {offsets = [0, 128], sizes = [16, 128], strides = [1, 1]} : vector<16x256xf32> to vector<16x128xf32>
      %42 = arith.truncf %41 : vector<16x128xf32> to vector<16x128xbf16>
      %c0_26 = arith.constant 0 : index
      %c0_27 = arith.constant 0 : index
      %43 = vector.load %arg12[%c0_26, %c0_27] : memref<16x128xbf16, #tpu.memory_space<vmem>>, vector<16x128xbf16>
      tpu.vector_store %arg12[%c0_26, %c0_27], %42 {strides = array<i32>} : memref<16x128xbf16, #tpu.memory_space<vmem>>, vector<16x128xbf16>,
      %cst_28 = arith.constant 0.000000e+00 : f32
      %44 = vector.broadcast %cst_28 : f32 to vector<1x128xf32>
      %c0_29 = arith.constant 0 : index
      %c0_30 = arith.constant 0 : index
      %45 = vector.load %arg13[%c0_29, %c0_30] : memref<1x128xf32, #tpu.memory_space<vmem>>, vector<1x128xf32>
      tpu.vector_store %arg13[%c0_29, %c0_30], %44 {strides = array<i32>} : memref<1x128xf32, #tpu.memory_space<vmem>>, vector<1x128xf32>,
    } else {
    }
    %c0_i32_1 = arith.constant 0 : i32
    %3 = arith.addi %c0_i32_1, %arg0 : i32
    %c16_i32 = arith.constant 16 : i32
    %4 = arith.muli %3, %c16_i32 : i32
    %5 = tpu.assume_multiple %4, 16 : i32
    %6 = arith.index_cast %5 : i32 to index
    %c0 = arith.constant 0 : index
    %7 = vector.load %arg11[%6, %c0] : memref<16x128xbf16, #tpu.memory_space<vmem>>, vector<16x128xbf16>
    %c0_2 = arith.constant 0 : index
    %c0_3 = arith.constant 0 : index
    %8 = vector.load %arg12[%c0_2, %c0_3] : memref<16x128xbf16, #tpu.memory_space<vmem>>, vector<16x128xbf16>
    %9 = vector.shape_cast %7 : vector<16x128xbf16> to vector<16x1x128xbf16>
    %10 = vector.shape_cast %8 : vector<16x128xbf16> to vector<1x16x128xbf16>
    %11 = vector.broadcast %9 : vector<16x1x128xbf16> to vector<16x16x128xbf16>
    %12 = vector.broadcast %10 : vector<1x16x128xbf16> to vector<16x16x128xbf16>
    %13 = arith.addf %11, %12 : vector<16x16x128xbf16>
    %cst = arith.constant 0.000000e+00 : bf16
    %14 = vector.broadcast %cst : bf16 to vector<16x16x128xbf16>
    %15 = arith.maximumf %13, %14 : vector<16x16x128xbf16>
    %16 = vector.shape_cast %15 : vector<16x16x128xbf16> to vector<256x128xbf16>
    %c0_4 = arith.constant 0 : index
    %c0_5 = arith.constant 0 : index
    %17 = vector.load %arg4[%c0_4, %c0_5] : memref<128x128xbf16, #tpu.memory_space<vmem>>, vector<128x128xbf16>
    %cst_6 = arith.constant dense<0.000000e+00> : vector<256x128xf32>
    %18 = tpu.matmul %16, %17, %cst_6 {dimension_numbers = #tpu.dot_dimension_numbers<[1], [0], [0], [1], [0, 0, 1, 1], [], []>} : vector<256x128xbf16>, vector<128x128xbf16>, vector<256x128xf32> -> vector<256x128xf32>
    %c0_7 = arith.constant 0 : index
    %c0_8 = arith.constant 0 : index
    %19 = vector.load %arg5[%c0_7, %c0_8] : memref<1x128xf32, #tpu.memory_space<vmem>>, vector<1x128xf32>
    %20 = vector.broadcast %19 : vector<1x128xf32> to vector<256x128xf32>
    %21 = arith.addf %18, %20 : vector<256x128xf32>
    %cst_9 = arith.constant 0.000000e+00 : f32
    %22 = vector.broadcast %cst_9 : f32 to vector<256x128xf32>
    %23 = arith.maximumf %21, %22 : vector<256x128xf32>
    %c0_10 = arith.constant 0 : index
    %c0_11 = arith.constant 0 : index
    %24 = vector.load %arg13[%c0_10, %c0_11] : memref<1x128xf32, #tpu.memory_space<vmem>>, vector<1x128xf32>
    %cst_12 = arith.constant dense<0.000000e+00> : vector<128xf32>
    %25 = vector.multi_reduction <add>, %23, %cst_12 [0] : vector<256x128xf32> to vector<128xf32>
    %26 = vector.shape_cast %25 : vector<128xf32> to vector<1x128xf32>
    %27 = arith.addf %24, %26 : vector<1x128xf32>
    %c0_13 = arith.constant 0 : index
    %c0_14 = arith.constant 0 : index
    %28 = vector.load %arg13[%c0_13, %c0_14] : memref<1x128xf32, #tpu.memory_space<vmem>>, vector<1x128xf32>
    tpu.vector_store %arg13[%c0_13, %c0_14], %27 {strides = array<i32>} : memref<1x128xf32, #tpu.memory_space<vmem>>, vector<1x128xf32>,
    %c0_i32_15 = arith.constant 0 : i32
    %29 = arith.cmpi eq, %arg0, %c0_i32_15 : i32
    %30 = arith.extui %29 : i1 to i32
    %c0_i32_16 = arith.constant 0 : i32
    %31 = arith.cmpi ne, %30, %c0_i32_16 : i32
    scf.if %31 {
      %c0_17 = arith.constant 0 : index
      %c0_18 = arith.constant 0 : index
      %32 = vector.load %arg13[%c0_17, %c0_18] : memref<1x128xf32, #tpu.memory_space<vmem>>, vector<1x128xf32>
      %cst_19 = arith.constant 3.906250e-03 : f32
      %33 = vector.broadcast %cst_19 : f32 to vector<1x128xf32>
      %34 = arith.mulf %32, %33 : vector<1x128xf32>
      %c0_20 = arith.constant 0 : index
      %c0_21 = arith.constant 0 : index
      %35 = vector.load %arg6[%c0_20, %c0_21] : memref<128x128xf32, #tpu.memory_space<vmem>>, vector<128x128xf32>
      %cst_22 = arith.constant dense<0.000000e+00> : vector<1x128xf32>
      %36 = tpu.matmul %34, %35, %cst_22 {dimension_numbers = #tpu.dot_dimension_numbers<[1], [0], [0], [1], [0, 0, 1, 1], [], []>} : vector<1x128xf32>, vector<128x128xf32>, vector<1x128xf32> -> vector<1x128xf32>
      %c0_23 = arith.constant 0 : index
      %c0_24 = arith.constant 0 : index
      %37 = vector.load %arg7[%c0_23, %c0_24] : memref<1x128xf32, #tpu.memory_space<vmem>>, vector<1x128xf32>
      %38 = arith.addf %36, %37 : vector<1x128xf32>
      %cst_25 = arith.constant 0.000000e+00 : f32
      %39 = vector.broadcast %cst_25 : f32 to vector<1x128xf32>
      %40 = arith.maximumf %38, %39 : vector<1x128xf32>
      %c0_26 = arith.constant 0 : index
      %c0_27 = arith.constant 0 : index
      %41 = vector.load %arg8[%c0_26, %c0_27] : memref<128x128xf32, #tpu.memory_space<vmem>>, vector<128x128xf32>
      %cst_28 = arith.constant dense<0.000000e+00> : vector<1x128xf32>
      %42 = tpu.matmul %40, %41, %cst_28 {dimension_numbers = #tpu.dot_dimension_numbers<[1], [0], [0], [1], [0, 0, 1, 1], [], []>} : vector<1x128xf32>, vector<128x128xf32>, vector<1x128xf32> -> vector<1x128xf32>
      %c0_29 = arith.constant 0 : index
      %c0_30 = arith.constant 0 : index
      %43 = vector.load %arg9[%c0_29, %c0_30] : memref<1x128xf32, #tpu.memory_space<vmem>>, vector<1x128xf32>
      %44 = arith.addf %42, %43 : vector<1x128xf32>
      %c0_31 = arith.constant 0 : index
      %c0_32 = arith.constant 0 : index
      %45 = vector.load %arg10[%c0_31, %c0_32] : memref<1x128xf32, #tpu.memory_space<vmem>>, vector<1x128xf32>
      tpu.vector_store %arg10[%c0_31, %c0_32], %44 {strides = array<i32>} : memref<1x128xf32, #tpu.memory_space<vmem>>, vector<1x128xf32>,
    } else {
    }
    return
  }
  func.func @transform_0(%arg0: i32) -> (i32, i32) {
    %c0_i32 = arith.constant 0 : i32
    %c0_i32_0 = arith.constant 0 : i32
    %c0_i32_1 = arith.constant 0 : i32
    return %c0_i32, %c0_i32_0 : i32, i32
  }
  func.func @transform_1(%arg0: i32) -> (i32, i32) {
    %c0_i32 = arith.constant 0 : i32
    %c0_i32_0 = arith.constant 0 : i32
    %c0_i32_1 = arith.constant 0 : i32
    return %c0_i32, %c0_i32_0 : i32, i32
  }
  func.func @transform_2(%arg0: i32) -> (i32, i32) {
    %c0_i32 = arith.constant 0 : i32
    %c0_i32_0 = arith.constant 0 : i32
    %c0_i32_1 = arith.constant 0 : i32
    return %c0_i32, %c0_i32_0 : i32, i32
  }
  func.func @transform_3(%arg0: i32) -> (i32, i32) {
    %c0_i32 = arith.constant 0 : i32
    %c0_i32_0 = arith.constant 0 : i32
    %c0_i32_1 = arith.constant 0 : i32
    return %c0_i32, %c0_i32_0 : i32, i32
  }
  func.func @transform_4(%arg0: i32) -> (i32, i32) {
    %c0_i32 = arith.constant 0 : i32
    %c0_i32_0 = arith.constant 0 : i32
    %c0_i32_1 = arith.constant 0 : i32
    return %c0_i32, %c0_i32_0 : i32, i32
  }
  func.func @transform_5(%arg0: i32) -> (i32, i32) {
    %c0_i32 = arith.constant 0 : i32
    %c0_i32_0 = arith.constant 0 : i32
    %c0_i32_1 = arith.constant 0 : i32
    return %c0_i32, %c0_i32_0 : i32, i32
  }
  func.func @transform_6(%arg0: i32) -> (i32, i32) {
    %c0_i32 = arith.constant 0 : i32
    %c0_i32_0 = arith.constant 0 : i32
    %c0_i32_1 = arith.constant 0 : i32
    return %c0_i32, %c0_i32_0 : i32, i32
  }
  func.func @transform_7(%arg0: i32) -> (i32, i32) {
    %c0_i32 = arith.constant 0 : i32
    %c0_i32_0 = arith.constant 0 : i32
    %c0_i32_1 = arith.constant 0 : i32
    return %c0_i32, %c0_i32_0 : i32, i32
  }
  func.func @transform_8(%arg0: i32) -> (i32, i32) {
    %c0_i32 = arith.constant 0 : i32
    %c0_i32_0 = arith.constant 0 : i32
    %c0_i32_1 = arith.constant 0 : i32
    return %c0_i32, %c0_i32_0 : i32, i32
  }
  func.func @transform_9(%arg0: i32) -> (i32, i32) {
    %c0_i32 = arith.constant 0 : i32
    %c0_i32_0 = arith.constant 0 : i32
    %c0_i32_1 = arith.constant 0 : i32
    return %c0_i32, %c0_i32_0 : i32, i32
  }
}

</mosaic_0001>

<llo_original>
// kernel: tpu_custom_call.1
$region0: #{tpu_custom_call.1}
  #allocation0 [shape = 'u32[]', space=smem, size = 0x4, offset = 0x4, fixed_abs, tag = 'smem constant byte address 0x4 - core index']
  #allocation1 [shape = 'u32[72,128]{1,0:T(1,128)}', space=vmem, size = 0x9000, scoped, tag = 'internal scratch']
  #allocation2 [shape = 'bf16[16,128]{1,0:T(8,128)(2,1)}', space=vmem, size = 0x1000, scoped, tag = 'scratch operand']
  #allocation3 [shape = 'bf16[16,128]{1,0:T(8,128)(2,1)}', space=vmem, size = 0x1000, scoped, tag = 'scratch operand']
  #allocation4 [shape = 'f32[1,128]{1,0:T(1,128)}', space=vmem, size = 0x200, scoped, tag = 'scratch operand']
  %s0 = inlined_call_operand.hbm [shape: f32[16,128], index: 0, kind: input, shape index: {}]
  %s1 = inlined_call_operand.hbm [shape: f32[128,256], index: 1, kind: input, shape index: {}]
  %s2 = inlined_call_operand.hbm [shape: f32[1,256], index: 2, kind: input, shape index: {}]
  %s3 = inlined_call_operand.hbm [shape: bf16[128,128], index: 3, kind: input, shape index: {}]
  %s4 = inlined_call_operand.vmem [shape: f32[1,128], index: 4, kind: input, shape index: {}]
  %s5 = inlined_call_operand.hbm [shape: f32[128,128], index: 5, kind: input, shape index: {}]
  %s6 = inlined_call_operand.vmem [shape: f32[1,128], index: 6, kind: input, shape index: {}]
  %s7 = inlined_call_operand.hbm [shape: f32[128,128], index: 7, kind: input, shape index: {}]
  %s8 = inlined_call_operand.vmem [shape: f32[1,128], index: 8, kind: input, shape index: {}]
  %s9 = inlined_call_operand.hbm [shape: f32[1,128], index: 9, kind: output, shape index: {}]
  %s10 = sld [smem:[#allocation0]]
  $region78: #{tpu_custom_call.1} parent=0
    _
  %s12 = ssub.s32 1, %s10
  %s13 = scalar_select 0, %s12, %s10
  $region1: #{tpu_custom_call.1} parent=0
    #allocation5 [shape = 'u8[8192]{0}', space=vmem, size = 0x2000, scoped, tag = 'input window, operand 0, single buffered']
    #allocation6 [shape = 's32[1]{0}', space=sflag, size = 0x4, scoped, tag = 'scoped memory for tpu_custom_call.1']
    #allocation7 [shape = 's32[1]{0}', space=sflag, size = 0x4, scoped, tag = 'scoped memory for tpu_custom_call.1']
    #allocation8 [shape = 'u8[131072]{0}', space=vmem, size = 0x20000, scoped, tag = 'input window, operand 1, single buffered']
    #allocation9 [shape = 's32[1]{0}', space=sflag, size = 0x4, scoped, tag = 'scoped memory for tpu_custom_call.1']
    #allocation10 [shape = 'u8[1024]{0}', space=vmem, size = 0x400, scoped, tag = 'input window, operand 2, single buffered']
    #allocation11 [shape = 'u8[32768]{0}', space=vmem, size = 0x8000, scoped, tag = 'input window, operand 3, single buffered']
    #allocation12 [shape = 's32[1]{0}', space=sflag, size = 0x4, scoped, tag = 'scoped memory for tpu_custom_call.1']
    #allocation13 [shape = 'u8[65536]{0}', space=vmem, size = 0x10000, scoped, tag = 'input window, operand 5, single buffered']
    #allocation14 [shape = 'u8[65536]{0}', space=vmem, size = 0x10000, scoped, tag = 'input window, operand 7, single buffered']
    #allocation15 [shape = 's32[1]{0}', space=sflag, size = 0x4, scoped, tag = 'scoped memory for tpu_custom_call.1']
    #allocation16 [shape = 'u8[512]{0}', space=vmem, size = 0x400, scoped, tag = 'output window, operand 0, single buffered']
    %14 = vsyncpa [#allocation6], 0
    %15 = vsyncpa [#allocation9], 0
    %16 = vsyncpa [#allocation12], 0
    %17 = vsyncpa [#allocation15], 0
    %18 = vsyncpa [#allocation7], 0
    // Predicated region
    $region2: #{tpu_custom_call.1} parent=1 // pred_check
      _
    $region3: #{tpu_custom_call.1} parent=1 // pred_check_branch
      %20 = sbr.rel (0) target = $region5
    $region4: #{tpu_custom_call.1} parent=1 // pred_region
      %22 = vsyncadd [#allocation6], 0
      %s23 = sshll.u32 %s0, 4
      %s24 = int_to_ptr.hbm [resolvable:$true] %s23
      %s25 = sshll.u32 [#allocation5], 4
      %s26 = int_to_ptr.vmem [resolvable:$true] %s25
      %31 = dma.hbm_to_vmem [thread:$0]  %s24, 256, %s26, [#allocation6], 128, 128, 8
    $region5: #{tpu_custom_call.1} parent=1 // pred_fallthru
      _
    // Predicated region
    $region6: #{tpu_custom_call.1} parent=1 // pred_check
      _
    $region7: #{tpu_custom_call.1} parent=1 // pred_check_branch
      %33 = sbr.rel (0) target = $region9
    $region8: #{tpu_custom_call.1} parent=1 // pred_region
      %35 = vsyncadd [#allocation9], 0
      %s36 = sshll.u32 %s1, 4
      %s37 = int_to_ptr.hbm [resolvable:$true] %s36
      %s38 = sshll.u32 [#allocation8], 4
      %s39 = int_to_ptr.vmem [resolvable:$true] %s38
      %44 = dma.hbm_to_vmem [thread:$0]  %s37, 4096, %s39, [#allocation9], 256, 256, 16
    $region9: #{tpu_custom_call.1} parent=1 // pred_fallthru
      _
    // Predicated region
    $region10: #{tpu_custom_call.1} parent=1 // pred_check
      _
    $region11: #{tpu_custom_call.1} parent=1 // pred_check_branch
      %46 = sbr.rel (0) target = $region13
    $region12: #{tpu_custom_call.1} parent=1 // pred_region
      %48 = vsyncadd [#allocation9], 0
      %s50 = sshll.u32 %s2, 4
      %s51 = int_to_ptr.hbm [resolvable:$true] %s50
      %s52 = sshll.u32 [#allocation10], 4
      %s53 = int_to_ptr.vmem [resolvable:$true] %s52
      %55 = dma.hbm_to_vmem [thread:$0]  %s51, 32, %s53, [#allocation9]
    $region13: #{tpu_custom_call.1} parent=1 // pred_fallthru
      _
    // Predicated region
    $region14: #{tpu_custom_call.1} parent=1 // pred_check
      _
    $region15: #{tpu_custom_call.1} parent=1 // pred_check_branch
      %57 = sbr.rel (0) target = $region17
    $region16: #{tpu_custom_call.1} parent=1 // pred_region
      %59 = vsyncadd [#allocation12], 0
      %s60 = sshll.u32 %s3, 4
      %s61 = int_to_ptr.hbm [resolvable:$true] %s60
      %s62 = sshll.u32 [#allocation11], 4
      %s63 = int_to_ptr.vmem [resolvable:$true] %s62
      %68 = dma.hbm_to_vmem [thread:$0]  %s61, 1024, %s63, [#allocation12], 64, 64, 4
    $region17: #{tpu_custom_call.1} parent=1 // pred_fallthru
      _
    // Predicated region
    $region18: #{tpu_custom_call.1} parent=1 // pred_check
      _
    $region19: #{tpu_custom_call.1} parent=1 // pred_check_branch
      %70 = sbr.rel (0) target = $region21
    $region20: #{tpu_custom_call.1} parent=1 // pred_region
      _
    $region21: #{tpu_custom_call.1} parent=1 // pred_fallthru
      _
    // Predicated region
    $region22: #{tpu_custom_call.1} parent=1 // pred_check
      _
    $region23: #{tpu_custom_call.1} parent=1 // pred_check_branch
      %72 = sbr.rel (0) target = $region25
    $region24: #{tpu_custom_call.1} parent=1 // pred_region
      %74 = vsyncadd [#allocation12], 0
      %s75 = sshll.u32 %s5, 4
      %s76 = int_to_ptr.hbm [resolvable:$true] %s75
      %s77 = sshll.u32 [#allocation13], 4
      %s78 = int_to_ptr.vmem [resolvable:$true] %s77
      %83 = dma.hbm_to_vmem [thread:$0]  %s76, 2048, %s78, [#allocation12], 128, 128, 8
    $region25: #{tpu_custom_call.1} parent=1 // pred_fallthru
      _
    // Predicated region
    $region26: #{tpu_custom_call.1} parent=1 // pred_check
      _
    $region27: #{tpu_custom_call.1} parent=1 // pred_check_branch
      %85 = sbr.rel (0) target = $region29
    $region28: #{tpu_custom_call.1} parent=1 // pred_region
      _
    $region29: #{tpu_custom_call.1} parent=1 // pred_fallthru
      _
    // Predicated region
    $region30: #{tpu_custom_call.1} parent=1 // pred_check
      _
    $region31: #{tpu_custom_call.1} parent=1 // pred_check_branch
      %87 = sbr.rel (0) target = $region33
    $region32: #{tpu_custom_call.1} parent=1 // pred_region
      %89 = vsyncadd [#allocation15], 0
      %s90 = sshll.u32 %s7, 4
      %s91 = int_to_ptr.hbm [resolvable:$true] %s90
      %s92 = sshll.u32 [#allocation14], 4
      %s93 = int_to_ptr.vmem [resolvable:$true] %s92
      %98 = dma.hbm_to_vmem [thread:$0]  %s91, 2048, %s93, [#allocation15], 128, 128, 8
    $region33: #{tpu_custom_call.1} parent=1 // pred_fallthru
      _
    // Predicated region
    $region34: #{tpu_custom_call.1} parent=1 // pred_check
      _
    $region35: #{tpu_custom_call.1} parent=1 // pred_check_branch
      %100 = sbr.rel (0) target = $region37
    $region36: #{tpu_custom_call.1} parent=1 // pred_region
      _
    $region37: #{tpu_custom_call.1} parent=1 // pred_fallthru
      _
    // Predicated region
    $region38: #{tpu_custom_call.1} parent=1 // pred_check
      _
    $region39: #{tpu_custom_call.1} parent=1 // pred_check_branch
      %102 = sbr.rel (0) target = $region41
    $region40: #{tpu_custom_call.1} parent=1 // pred_region
      %104 = dma.done [#allocation6], 256
    $region41: #{tpu_custom_call.1} parent=1 // pred_fallthru
      _
    // Predicated region
    $region42: #{tpu_custom_call.1} parent=1 // pred_check
      _
    $region43: #{tpu_custom_call.1} parent=1 // pred_check_branch
      %106 = sbr.rel (0) target = $region45
    $region44: #{tpu_custom_call.1} parent=1 // pred_region
      %108 = dma.done [#allocation9], 4096
    $region45: #{tpu_custom_call.1} parent=1 // pred_fallthru
      _
    // Predicated region
    $region46: #{tpu_custom_call.1} parent=1 // pred_check
      _
    $region47: #{tpu_custom_call.1} parent=1 // pred_check_branch
      %110 = sbr.rel (0) target = $region49
    $region48: #{tpu_custom_call.1} parent=1 // pred_region
      %112 = dma.done [#allocation9], 32
    $region49: #{tpu_custom_call.1} parent=1 // pred_fallthru
      _
    // Predicated region
    $region50: #{tpu_custom_call.1} parent=1 // pred_check
      _
    $region51: #{tpu_custom_call.1} parent=1 // pred_check_branch
      %114 = sbr.rel (0) target = $region53
    $region52: #{tpu_custom_call.1} parent=1 // pred_region
      %116 = dma.done [#allocation12], 1024
    $region53: #{tpu_custom_call.1} parent=1 // pred_fallthru
      _
    // Predicated region
    $region54: #{tpu_custom_call.1} parent=1 // pred_check
      _
    $region55: #{tpu_custom_call.1} parent=1 // pred_check_branch
      %118 = sbr.rel (0) target = $region57
    $region56: #{tpu_custom_call.1} parent=1 // pred_region
      %120 = dma.done [#allocation12], 2048
    $region57: #{tpu_custom_call.1} parent=1 // pred_fallthru
      _
    // Predicated region
    $region58: #{tpu_custom_call.1} parent=1 // pred_check
      _
    $region59: #{tpu_custom_call.1} parent=1 // pred_check_branch
      %122 = sbr.rel (0) target = $region61
    $region60: #{tpu_custom_call.1} parent=1 // pred_region
      %124 = dma.done [#allocation15], 2048
    $region61: #{tpu_custom_call.1} parent=1 // pred_fallthru
      _
    %p125 = scmp.eq.s32.totalorder 0, 0
    // Predicated region
    $region62: #{tpu_custom_call.1} parent=1 // pred_check
      %p126 = pneg %p125
    $region63: #{tpu_custom_call.1} parent=1 // pred_check_branch
      %128 = sbr.rel (%p126) target = $region65
    $region64: #{tpu_custom_call.1} parent=1 // pred_region
      %v129 = vld [vmem:[#allocation5] sm:$0xff]
      %v130 = vld [vmem:[#allocation5 + $0x8] sm:$0xff]
      %v131 = vld [vmem:[#allocation8] sm:$0xff]
      %v132 = vld [vmem:[#allocation8 + $0x8] sm:$0xff]
      %v133 = vld [vmem:[#allocation8 + $0x10] sm:$0xff]
      %v134 = vld [vmem:[#allocation8 + $0x18] sm:$0xff]
      %v135 = vld [vmem:[#allocation8 + $0x20] sm:$0xff]
      %v136 = vld [vmem:[#allocation8 + $0x28] sm:$0xff]
      %v137 = vld [vmem:[#allocation8 + $0x30] sm:$0xff]
      %v138 = vld [vmem:[#allocation8 + $0x38] sm:$0xff]
      %v139 = vld [vmem:[#allocation8 + $0x40] sm:$0xff]
      %v140 = vld [vmem:[#allocation8 + $0x48] sm:$0xff]
      %v141 = vld [vmem:[#allocation8 + $0x50] sm:$0xff]
      %v142 = vld [vmem:[#allocation8 + $0x58] sm:$0xff]
      %v143 = vld [vmem:[#allocation8 + $0x60] sm:$0xff]
      %v144 = vld [vmem:[#allocation8 + $0x68] sm:$0xff]
      %v145 = vld [vmem:[#allocation8 + $0x70] sm:$0xff]
      %v146 = vld [vmem:[#allocation8 + $0x78] sm:$0xff]
      %v147 = vld [vmem:[#allocation8 + $0x80] sm:$0xff]
      %v148 = vld [vmem:[#allocation8 + $0x88] sm:$0xff]
      %v149 = vld [vmem:[#allocation8 + $0x90] sm:$0xff]
      %v150 = vld [vmem:[#allocation8 + $0x98] sm:$0xff]
      %v151 = vld [vmem:[#allocation8 + $0xa0] sm:$0xff]
      %v152 = vld [vmem:[#allocation8 + $0xa8] sm:$0xff]
      %v153 = vld [vmem:[#allocation8 + $0xb0] sm:$0xff]
      %v154 = vld [vmem:[#allocation8 + $0xb8] sm:$0xff]
      %v155 = vld [vmem:[#allocation8 + $0xc0] sm:$0xff]
      %v156 = vld [vmem:[#allocation8 + $0xc8] sm:$0xff]
      %v157 = vld [vmem:[#allocation8 + $0xd0] sm:$0xff]
      %v158 = vld [vmem:[#allocation8 + $0xd8] sm:$0xff]
      %v159 = vld [vmem:[#allocation8 + $0xe0] sm:$0xff]
      %v160 = vld [vmem:[#allocation8 + $0xe8] sm:$0xff]
      %v161 = vld [vmem:[#allocation8 + $0xf0] sm:$0xff]
      %v162 = vld [vmem:[#allocation8 + $0xf8] sm:$0xff]
      %v163 = vld [vmem:[#allocation10] sm:$0x3]
      %v165 = vperm.slane %v163, 0
      %v166 = vperm.slane %v163, 1
      %169 = vmatpush.msra.mxu0 %v161
      %170 = vmatpush.msra.mxu0 %v159
      %171 = vmatpush.msra.mxu0 %v157
      %172 = vmatpush.msra.mxu0 %v155
      %173 = vmatpush.msra.mxu0 %v153
      %174 = vmatpush.msra.mxu0 %v151
      %175 = vmatpush.msra.mxu0 %v149
      %176 = vmatpush.msra.mxu0 %v147
      %177 = vmatpush.msra.mxu0 %v145
      %178 = vmatpush.msra.mxu0 %v143
      %179 = vmatpush.msra.mxu0 %v141
      %180 = vmatpush.msra.mxu0 %v139
      %181 = vmatpush.msra.mxu0 %v137
      %182 = vmatpush.msra.mxu0 %v135
      %183 = vmatpush.msra.mxu0 %v133
      %184 = vmatpush.msra.mxu0 %v131
      %185 = vmatmul.f32.gmra.mxu0 %v129
      %v186 = vpop.f32.mrf.mxu0
      %v187 = vadd.f32 %v165, %v186
      %188 = vmatmul.f32.gmra.mxu0 %v130
      %v189 = vpop.f32.mrf.mxu0
      %v190 = vadd.f32 %v165, %v189
      %191 = vdwg.mxu0
      %192 = vmatpush.msra.mxu0 %v162
      %193 = vmatpush.msra.mxu0 %v160
      %194 = vmatpush.msra.mxu0 %v158
      %195 = vmatpush.msra.mxu0 %v156
      %196 = vmatpush.msra.mxu0 %v154
      %197 = vmatpush.msra.mxu0 %v152
      %198 = vmatpush.msra.mxu0 %v150
      %199 = vmatpush.msra.mxu0 %v148
      %200 = vmatpush.msra.mxu0 %v146
      %201 = vmatpush.msra.mxu0 %v144
      %202 = vmatpush.msra.mxu0 %v142
      %203 = vmatpush.msra.mxu0 %v140
      %204 = vmatpush.msra.mxu0 %v138
      %205 = vmatpush.msra.mxu0 %v136
      %206 = vmatpush.msra.mxu0 %v134
      %207 = vmatpush.msra.mxu0 %v132
      %208 = vmatmul.f32.gmra.mxu0 %v129
      %v209 = vpop.f32.mrf.mxu0
      %v210 = vadd.f32 %v166, %v209
      %211 = vmatmul.f32.gmra.mxu0 %v130
      %v212 = vpop.f32.mrf.mxu0
      %v213 = vadd.f32 %v166, %v212
      %214 = vdwg.mxu0
      %v215 = vpack.c.bf16 %v187, %v187
      %v216 = vpack.c.bf16 %v190, %v190
      %217 = vst [vmem:[#allocation2] sm:$0xf] %v215
      %218 = vst [vmem:[#allocation2 + $0x4] sm:$0xf] %v216
      %v219 = vpack.c.bf16 %v210, %v210
      %v220 = vpack.c.bf16 %v213, %v213
      %221 = vst [vmem:[#allocation3] sm:$0xf] %v219
      %222 = vst [vmem:[#allocation3 + $0x4] sm:$0xf] %v220
      %223 = vst [vmem:[#allocation4] sm:$0x1] 0.0
    $region65: #{tpu_custom_call.1} parent=1 // pred_fallthru
      _
    %s224 = smul.u32 0, 16
    %s225 = sshra.s32 %s224, 3
    %s226 = sand.u32 %s224, 7
    %s227 = smul.addr %s225, 4
    %s228 = scalar_lea.vmem [#allocation2], %s227
    %v229 = vld [vmem:[%s228] sm:$0xf]
    %v230 = vld [vmem:[%s228 + $0x4] sm:$0xf]
    %v231 = vld [vmem:[#allocation3] sm:$0xf]
    %v232 = vld [vmem:[#allocation3 + $0x4] sm:$0xf]
    %v235 = vrot.slane %v229, 3
    %v236 = vrot.slane %v230, 3
    %vm237 = vcmask 1040384
    %v240 = vsel %vm237, %v229, %v235
    %vm242 = vcmask 1041409
    %v243 = vsel %vm242, %v229, %v235
    %v245 = vrot.slane %v243, 1
    %vm246 = vcmask 1042434
    %v247 = vsel %vm246, %v229, %v235
    %v249 = vrot.slane %v247, 2
    %vm250 = vcmask 1043459
    %v251 = vsel %vm250, %v229, %v235
    %v253 = vrot.slane %v251, 3
    %v256 = vsel %vm237, %v230, %v236
    %v258 = vsel %vm242, %v230, %v236
    %v260 = vrot.slane %v258, 1
    %v261 = vsel %vm246, %v230, %v236
    %v263 = vrot.slane %v261, 2
    %v264 = vsel %vm250, %v230, %v236
    %v266 = vrot.slane %v264, 3
    %v267 = vunpack.i.l.s16 %v240
    %v268 = vunpack.i.h.s16 %v240
    %v269 = vunpack.i.l.s16 %v245
    %v270 = vunpack.i.h.s16 %v245
    %v271 = vunpack.i.l.s16 %v249
    %v272 = vunpack.i.h.s16 %v249
    %v273 = vunpack.i.l.s16 %v253
    %v274 = vunpack.i.h.s16 %v253
    %v275 = vunpack.i.l.s16 %v256
    %v276 = vunpack.i.h.s16 %v256
    %v277 = vunpack.i.l.s16 %v260
    %v278 = vunpack.i.h.s16 %v260
    %v279 = vunpack.i.l.s16 %v263
    %v280 = vunpack.i.h.s16 %v263
    %v281 = vunpack.i.l.s16 %v266
    %v282 = vunpack.i.h.s16 %v266
    %v283 = vpack.i.b16 %v267, %v267
    %v284 = vpack.i.b16 %v268, %v268
    %v285 = vpack.i.b16 %v269, %v269
    %v286 = vpack.i.b16 %v270, %v270
    %v287 = vpack.i.b16 %v271, %v271
    %v288 = vpack.i.b16 %v272, %v272
    %v289 = vpack.i.b16 %v273, %v273
    %v290 = vpack.i.b16 %v274, %v274
    %v291 = vpack.i.b16 %v275, %v275
    %v292 = vpack.i.b16 %v276, %v276
    %v293 = vpack.i.b16 %v277, %v277
    %v294 = vpack.i.b16 %v278, %v278
    %v295 = vpack.i.b16 %v279, %v279
    %v296 = vpack.i.b16 %v280, %v280
    %v297 = vpack.i.b16 %v281, %v281
    %v298 = vpack.i.b16 %v282, %v282
    %v299 = vperm.slane %v283, 0
    %v300 = vperm.slane %v284, 0
    %v301 = vperm.slane %v285, 0
    %v302 = vperm.slane %v286, 0
    %v303 = vperm.slane %v287, 0
    %v304 = vperm.slane %v288, 0
    %v305 = vperm.slane %v289, 0
    %v306 = vperm.slane %v290, 0
    %v307 = vperm.slane %v291, 0
    %v308 = vperm.slane %v292, 0
    %v309 = vperm.slane %v293, 0
    %v310 = vperm.slane %v294, 0
    %v311 = vperm.slane %v295, 0
    %v312 = vperm.slane %v296, 0
    %v313 = vperm.slane %v297, 0
    %v314 = vperm.slane %v298, 0
    %v316 = vpack.i.b16 %v299, %v299
    %v318 = vperm.slane %v316, 0
    %v320 = vpack.i.b16 %v300, %v300
    %v322 = vperm.slane %v320, 0
    %v324 = vpack.i.b16 %v301, %v301
    %v326 = vperm.slane %v324, 0
    %v328 = vpack.i.b16 %v302, %v302
    %v330 = vperm.slane %v328, 0
    %v332 = vpack.i.b16 %v303, %v303
    %v334 = vperm.slane %v332, 0
    %v336 = vpack.i.b16 %v304, %v304
    %v338 = vperm.slane %v336, 0
    %v340 = vpack.i.b16 %v305, %v305
    %v342 = vperm.slane %v340, 0
    %v344 = vpack.i.b16 %v306, %v306
    %v346 = vperm.slane %v344, 0
    %v348 = vpack.i.b16 %v307, %v307
    %v350 = vperm.slane %v348, 0
    %v352 = vpack.i.b16 %v308, %v308
    %v354 = vperm.slane %v352, 0
    %v356 = vpack.i.b16 %v309, %v309
    %v358 = vperm.slane %v356, 0
    %v360 = vpack.i.b16 %v310, %v310
    %v362 = vperm.slane %v360, 0
    %v364 = vpack.i.b16 %v311, %v311
    %v366 = vperm.slane %v364, 0
    %v368 = vpack.i.b16 %v312, %v312
    %v370 = vperm.slane %v368, 0
    %v372 = vpack.i.b16 %v313, %v313
    %v374 = vperm.slane %v372, 0
    %v376 = vpack.i.b16 %v314, %v314
    %v378 = vperm.slane %v376, 0
    %v379 = vunpack.c.l.bf16 %v318
    %v380 = vunpack.c.l.bf16 %v322
    %v381 = vunpack.c.l.bf16 %v326
    %v382 = vunpack.c.l.bf16 %v330
    %v383 = vunpack.c.l.bf16 %v334
    %v384 = vunpack.c.l.bf16 %v338
    %v385 = vunpack.c.l.bf16 %v342
    %v386 = vunpack.c.l.bf16 %v346
    %v387 = vunpack.c.l.bf16 %v350
    %v388 = vunpack.c.l.bf16 %v354
    %v389 = vunpack.c.l.bf16 %v358
    %v390 = vunpack.c.l.bf16 %v362
    %v391 = vunpack.c.l.bf16 %v366
    %v392 = vunpack.c.l.bf16 %v370
    %v393 = vunpack.c.l.bf16 %v374
    %v394 = vunpack.c.l.bf16 %v378
    %v395 = vunpack.c.l.bf16 %v231
    %v396 = vunpack.c.l.bf16 %v232
    %v397 = vadd.f32 %v379, %v395
    %v398 = vadd.f32 %v379, %v396
    %v399 = vadd.f32 %v380, %v395
    %v400 = vadd.f32 %v380, %v396
    %v401 = vadd.f32 %v381, %v395
    %v402 = vadd.f32 %v381, %v396
    %v403 = vadd.f32 %v382, %v395
    %v404 = vadd.f32 %v382, %v396
    %v405 = vadd.f32 %v383, %v395
    %v406 = vadd.f32 %v383, %v396
    %v407 = vadd.f32 %v384, %v395
    %v408 = vadd.f32 %v384, %v396
    %v409 = vadd.f32 %v385, %v395
    %v410 = vadd.f32 %v385, %v396
    %v411 = vadd.f32 %v386, %v395
    %v412 = vadd.f32 %v386, %v396
    %v413 = vadd.f32 %v387, %v395
    %v414 = vadd.f32 %v387, %v396
    %v415 = vadd.f32 %v388, %v395
    %v416 = vadd.f32 %v388, %v396
    %v417 = vadd.f32 %v389, %v395
    %v418 = vadd.f32 %v389, %v396
    %v419 = vadd.f32 %v390, %v395
    %v420 = vadd.f32 %v390, %v396
    %v421 = vadd.f32 %v391, %v395
    %v422 = vadd.f32 %v391, %v396
    %v423 = vadd.f32 %v392, %v395
    %v424 = vadd.f32 %v392, %v396
    %v425 = vadd.f32 %v393, %v395
    %v426 = vadd.f32 %v393, %v396
    %v427 = vadd.f32 %v394, %v395
    %v428 = vadd.f32 %v394, %v396
    %v429 = vpack.c.bf16 %v397, %v397
    %v430 = vpack.c.bf16 %v398, %v398
    %v431 = vpack.c.bf16 %v399, %v399
    %v432 = vpack.c.bf16 %v400, %v400
    %v433 = vpack.c.bf16 %v401, %v401
    %v434 = vpack.c.bf16 %v402, %v402
    %v435 = vpack.c.bf16 %v403, %v403
    %v436 = vpack.c.bf16 %v404, %v404
    %v437 = vpack.c.bf16 %v405, %v405
    %v438 = vpack.c.bf16 %v406, %v406
    %v439 = vpack.c.bf16 %v407, %v407
    %v440 = vpack.c.bf16 %v408, %v408
    %v441 = vpack.c.bf16 %v409, %v409
    %v442 = vpack.c.bf16 %v410, %v410
    %v443 = vpack.c.bf16 %v411, %v411
    %v444 = vpack.c.bf16 %v412, %v412
    %v445 = vpack.c.bf16 %v413, %v413
    %v446 = vpack.c.bf16 %v414, %v414
    %v447 = vpack.c.bf16 %v415, %v415
    %v448 = vpack.c.bf16 %v416, %v416
    %v449 = vpack.c.bf16 %v417, %v417
    %v450 = vpack.c.bf16 %v418, %v418
    %v451 = vpack.c.bf16 %v419, %v419
    %v452 = vpack.c.bf16 %v420, %v420
    %v453 = vpack.c.bf16 %v421, %v421
    %v454 = vpack.c.bf16 %v422, %v422
    %v455 = vpack.c.bf16 %v423, %v423
    %v456 = vpack.c.bf16 %v424, %v424
    %v457 = vpack.c.bf16 %v425, %v425
    %v458 = vpack.c.bf16 %v426, %v426
    %v459 = vpack.c.bf16 %v427, %v427
    %v460 = vpack.c.bf16 %v428, %v428
    %v461 = vunpack.c.l.bf16 %v429
    %v462 = vunpack.c.l.bf16 %v430
    %v463 = vunpack.c.l.bf16 %v431
    %v464 = vunpack.c.l.bf16 %v432
    %v465 = vunpack.c.l.bf16 %v433
    %v466 = vunpack.c.l.bf16 %v434
    %v467 = vunpack.c.l.bf16 %v435
    %v468 = vunpack.c.l.bf16 %v436
    %v469 = vunpack.c.l.bf16 %v437
    %v470 = vunpack.c.l.bf16 %v438
    %v471 = vunpack.c.l.bf16 %v439
    %v472 = vunpack.c.l.bf16 %v440
    %v473 = vunpack.c.l.bf16 %v441
    %v474 = vunpack.c.l.bf16 %v442
    %v475 = vunpack.c.l.bf16 %v443
    %v476 = vunpack.c.l.bf16 %v444
    %v477 = vunpack.c.l.bf16 %v445
    %v478 = vunpack.c.l.bf16 %v446
    %v479 = vunpack.c.l.bf16 %v447
    %v480 = vunpack.c.l.bf16 %v448
    %v481 = vunpack.c.l.bf16 %v449
    %v482 = vunpack.c.l.bf16 %v450
    %v483 = vunpack.c.l.bf16 %v451
    %v484 = vunpack.c.l.bf16 %v452
    %v485 = vunpack.c.l.bf16 %v453
    %v486 = vunpack.c.l.bf16 %v454
    %v487 = vunpack.c.l.bf16 %v455
    %v488 = vunpack.c.l.bf16 %v456
    %v489 = vunpack.c.l.bf16 %v457
    %v490 = vunpack.c.l.bf16 %v458
    %v491 = vunpack.c.l.bf16 %v459
    %v492 = vunpack.c.l.bf16 %v460
    %v493 = vmax.f32 %v461, 0.0
    %v494 = vmax.f32 %v462, 0.0
    %v495 = vmax.f32 %v463, 0.0
    %v496 = vmax.f32 %v464, 0.0
    %v497 = vmax.f32 %v465, 0.0
    %v498 = vmax.f32 %v466, 0.0
    %v499 = vmax.f32 %v467, 0.0
    %v500 = vmax.f32 %v468, 0.0
    %v501 = vmax.f32 %v469, 0.0
    %v502 = vmax.f32 %v470, 0.0
    %v503 = vmax.f32 %v471, 0.0
    %v504 = vmax.f32 %v472, 0.0
    %v505 = vmax.f32 %v473, 0.0
    %v506 = vmax.f32 %v474, 0.0
    %v507 = vmax.f32 %v475, 0.0
    %v508 = vmax.f32 %v476, 0.0
    %v509 = vmax.f32 %v477, 0.0
    %v510 = vmax.f32 %v478, 0.0
    %v511 = vmax.f32 %v479, 0.0
    %v512 = vmax.f32 %v480, 0.0
    %v513 = vmax.f32 %v481, 0.0
    %v514 = vmax.f32 %v482, 0.0
    %v515 = vmax.f32 %v483, 0.0
    %v516 = vmax.f32 %v484, 0.0
    %v517 = vmax.f32 %v485, 0.0
    %v518 = vmax.f32 %v486, 0.0
    %v519 = vmax.f32 %v487, 0.0
    %v520 = vmax.f32 %v488, 0.0
    %v521 = vmax.f32 %v489, 0.0
    %v522 = vmax.f32 %v490, 0.0
    %v523 = vmax.f32 %v491, 0.0
    %v524 = vmax.f32 %v492, 0.0
    %v525 = vpack.c.bf16 %v493, %v493
    %v526 = vpack.c.bf16 %v494, %v494
    %v527 = vpack.c.bf16 %v495, %v495
    %v528 = vpack.c.bf16 %v496, %v496
    %v529 = vpack.c.bf16 %v497, %v497
    %v530 = vpack.c.bf16 %v498, %v498
    %v531 = vpack.c.bf16 %v499, %v499
    %v532 = vpack.c.bf16 %v500, %v500
    %v533 = vpack.c.bf16 %v501, %v501
    %v534 = vpack.c.bf16 %v502, %v502
    %v535 = vpack.c.bf16 %v503, %v503
    %v536 = vpack.c.bf16 %v504, %v504
    %v537 = vpack.c.bf16 %v505, %v505
    %v538 = vpack.c.bf16 %v506, %v506
    %v539 = vpack.c.bf16 %v507, %v507
    %v540 = vpack.c.bf16 %v508, %v508
    %v541 = vpack.c.bf16 %v509, %v509
    %v542 = vpack.c.bf16 %v510, %v510
    %v543 = vpack.c.bf16 %v511, %v511
    %v544 = vpack.c.bf16 %v512, %v512
    %v545 = vpack.c.bf16 %v513, %v513
    %v546 = vpack.c.bf16 %v514, %v514
    %v547 = vpack.c.bf16 %v515, %v515
    %v548 = vpack.c.bf16 %v516, %v516
    %v549 = vpack.c.bf16 %v517, %v517
    %v550 = vpack.c.bf16 %v518, %v518
    %v551 = vpack.c.bf16 %v519, %v519
    %v552 = vpack.c.bf16 %v520, %v520
    %v553 = vpack.c.bf16 %v521, %v521
    %v554 = vpack.c.bf16 %v522, %v522
    %v555 = vpack.c.bf16 %v523, %v523
    %v556 = vpack.c.bf16 %v524, %v524
    %v557 = vld [vmem:[#allocation11] sm:$0xf]
    %v558 = vld [vmem:[#allocation11 + $0x4] sm:$0xf]
    %v559 = vld [vmem:[#allocation11 + $0x8] sm:$0xf]
    %v560 = vld [vmem:[#allocation11 + $0xc] sm:$0xf]
    %v561 = vld [vmem:[#allocation11 + $0x10] sm:$0xf]
    %v562 = vld [vmem:[#allocation11 + $0x14] sm:$0xf]
    %v563 = vld [vmem:[#allocation11 + $0x18] sm:$0xf]
    %v564 = vld [vmem:[#allocation11 + $0x1c] sm:$0xf]
    %v565 = vld [vmem:[#allocation11 + $0x20] sm:$0xf]
    %v566 = vld [vmem:[#allocation11 + $0x24] sm:$0xf]
    %v567 = vld [vmem:[#allocation11 + $0x28] sm:$0xf]
    %v568 = vld [vmem:[#allocation11 + $0x2c] sm:$0xf]
    %v569 = vld [vmem:[#allocation11 + $0x30] sm:$0xf]
    %v570 = vld [vmem:[#allocation11 + $0x34] sm:$0xf]
    %v571 = vld [vmem:[#allocation11 + $0x38] sm:$0xf]
    %v572 = vld [vmem:[#allocation11 + $0x3c] sm:$0xf]
    %v573 = vld [vmem:[%s4] sm:$0x1]
    %v575 = vperm.slane %v573, 0
    %v609 = vunpack.c.l.b16 %v525
    %v610 = vunpack.c.l.b16 %v526
    %v611 = vunpack.c.l.b16 %v527
    %v612 = vunpack.c.l.b16 %v528
    %v613 = vunpack.c.l.b16 %v529
    %v614 = vunpack.c.l.b16 %v530
    %v615 = vunpack.c.l.b16 %v531
    %v616 = vunpack.c.l.b16 %v532
    %v617 = vunpack.c.l.b16 %v533
    %v618 = vunpack.c.l.b16 %v534
    %v619 = vunpack.c.l.b16 %v535
    %v620 = vunpack.c.l.b16 %v536
    %v621 = vunpack.c.l.b16 %v537
    %v622 = vunpack.c.l.b16 %v538
    %v623 = vunpack.c.l.b16 %v539
    %v624 = vunpack.c.l.b16 %v540
    %v625 = vunpack.c.l.b16 %v541
    %v626 = vunpack.c.l.b16 %v542
    %v627 = vunpack.c.l.b16 %v543
    %v628 = vunpack.c.l.b16 %v544
    %v629 = vunpack.c.l.b16 %v545
    %v630 = vunpack.c.l.b16 %v546
    %v631 = vunpack.c.l.b16 %v547
    %v632 = vunpack.c.l.b16 %v548
    %v633 = vunpack.c.l.b16 %v549
    %v634 = vunpack.c.l.b16 %v550
    %v635 = vunpack.c.l.b16 %v551
    %v636 = vunpack.c.l.b16 %v552
    %v637 = vunpack.c.l.b16 %v553
    %v638 = vunpack.c.l.b16 %v554
    %v639 = vunpack.c.l.b16 %v555
    %v640 = vunpack.c.l.b16 %v556
    %v641 = vpack.c.b16 %v610, %v609
    %v642 = vpack.c.b16 %v612, %v611
    %v643 = vpack.c.b16 %v614, %v613
    %v644 = vpack.c.b16 %v616, %v615
    %v645 = vpack.c.b16 %v618, %v617
    %v646 = vpack.c.b16 %v620, %v619
    %v647 = vpack.c.b16 %v622, %v621
    %v648 = vpack.c.b16 %v624, %v623
    %v649 = vpack.c.b16 %v626, %v625
    %v650 = vpack.c.b16 %v628, %v627
    %v651 = vpack.c.b16 %v630, %v629
    %v652 = vpack.c.b16 %v632, %v631
    %v653 = vpack.c.b16 %v634, %v633
    %v654 = vpack.c.b16 %v636, %v635
    %v655 = vpack.c.b16 %v638, %v637
    %v656 = vpack.c.b16 %v640, %v639
    %v689 = vunpack.c.l.b16 %v557
    %v690 = vunpack.c.l.b16 %v558
    %v691 = vunpack.c.l.b16 %v559
    %v692 = vunpack.c.l.b16 %v560
    %v693 = vunpack.c.l.b16 %v561
    %v694 = vunpack.c.l.b16 %v562
    %v695 = vunpack.c.l.b16 %v563
    %v696 = vunpack.c.l.b16 %v564
    %v697 = vunpack.c.l.b16 %v565
    %v698 = vunpack.c.l.b16 %v566
    %v699 = vunpack.c.l.b16 %v567
    %v700 = vunpack.c.l.b16 %v568
    %v701 = vunpack.c.l.b16 %v569
    %v702 = vunpack.c.l.b16 %v570
    %v703 = vunpack.c.l.b16 %v571
    %v704 = vunpack.c.l.b16 %v572
    %v705 = vpack.c.b16 %v690, %v689
    %v706 = vpack.c.b16 %v692, %v691
    %v707 = vpack.c.b16 %v694, %v693
    %v708 = vpack.c.b16 %v696, %v695
    %v709 = vpack.c.b16 %v698, %v697
    %v710 = vpack.c.b16 %v700, %v699
    %v711 = vpack.c.b16 %v702, %v701
    %v712 = vpack.c.b16 %v704, %v703
    %721 = vmatpush.bf16.msra.mxu0 %v712
    %722 = vmatpush.bf16.msra.mxu0 %v711
    %723 = vmatpush.bf16.msra.mxu0 %v710
    %724 = vmatpush.bf16.msra.mxu0 %v709
    %725 = vmatpush.bf16.msra.mxu0 %v708
    %726 = vmatpush.bf16.msra.mxu0 %v707
    %727 = vmatpush.bf16.msra.mxu0 %v706
    %728 = vmatpush.bf16.msra.mxu0 %v705
    %729 = vmatmul.bf16.gmra.mxu0 %v641
    %v730 = vpop.f32.mrf.mxu0
    %v731 = vadd.f32 %v575, %v730
    %v732 = vpop.f32.mrf.mxu0
    %v733 = vadd.f32 %v575, %v732
    %734 = vmatmul.bf16.gmra.mxu0 %v642
    %v735 = vpop.f32.mrf.mxu0
    %v736 = vadd.f32 %v575, %v735
    %v737 = vpop.f32.mrf.mxu0
    %v738 = vadd.f32 %v575, %v737
    %739 = vmatmul.bf16.gmra.mxu0 %v643
    %v740 = vpop.f32.mrf.mxu0
    %v741 = vadd.f32 %v575, %v740
    %v742 = vpop.f32.mrf.mxu0
    %v743 = vadd.f32 %v575, %v742
    %744 = vmatmul.bf16.gmra.mxu0 %v644
    %v745 = vpop.f32.mrf.mxu0
    %v746 = vadd.f32 %v575, %v745
    %v747 = vpop.f32.mrf.mxu0
    %v748 = vadd.f32 %v575, %v747
    %749 = vmatmul.bf16.gmra.mxu0 %v645
    %v750 = vpop.f32.mrf.mxu0
    %v751 = vadd.f32 %v575, %v750
    %v752 = vpop.f32.mrf.mxu0
    %v753 = vadd.f32 %v575, %v752
    %754 = vmatmul.bf16.gmra.mxu0 %v646
    %v755 = vpop.f32.mrf.mxu0
    %v756 = vadd.f32 %v575, %v755
    %v757 = vpop.f32.mrf.mxu0
    %v758 = vadd.f32 %v575, %v757
    %759 = vmatmul.bf16.gmra.mxu0 %v647
    %v760 = vpop.f32.mrf.mxu0
    %v761 = vadd.f32 %v575, %v760
    %v762 = vpop.f32.mrf.mxu0
    %v763 = vadd.f32 %v575, %v762
    %764 = vmatmul.bf16.gmra.mxu0 %v648
    %v765 = vpop.f32.mrf.mxu0
    %v766 = vadd.f32 %v575, %v765
    %v767 = vpop.f32.mrf.mxu0
    %v768 = vadd.f32 %v575, %v767
    %769 = vmatmul.bf16.gmra.mxu0 %v649
    %v770 = vpop.f32.mrf.mxu0
    %v771 = vadd.f32 %v575, %v770
    %v772 = vpop.f32.mrf.mxu0
    %v773 = vadd.f32 %v575, %v772
    %774 = vmatmul.bf16.gmra.mxu0 %v650
    %v775 = vpop.f32.mrf.mxu0
    %v776 = vadd.f32 %v575, %v775
    %v777 = vpop.f32.mrf.mxu0
    %v778 = vadd.f32 %v575, %v777
    %779 = vmatmul.bf16.gmra.mxu0 %v651
    %v780 = vpop.f32.mrf.mxu0
    %v781 = vadd.f32 %v575, %v780
    %v782 = vpop.f32.mrf.mxu0
    %v783 = vadd.f32 %v575, %v782
    %784 = vmatmul.bf16.gmra.mxu0 %v652
    %v785 = vpop.f32.mrf.mxu0
    %v786 = vadd.f32 %v575, %v785
    %v787 = vpop.f32.mrf.mxu0
    %v788 = vadd.f32 %v575, %v787
    %789 = vmatmul.bf16.gmra.mxu0 %v653
    %v790 = vpop.f32.mrf.mxu0
    %v791 = vadd.f32 %v575, %v790
    %v792 = vpop.f32.mrf.mxu0
    %v793 = vadd.f32 %v575, %v792
    %794 = vmatmul.bf16.gmra.mxu0 %v654
    %v795 = vpop.f32.mrf.mxu0
    %v796 = vadd.f32 %v575, %v795
    %v797 = vpop.f32.mrf.mxu0
    %v798 = vadd.f32 %v575, %v797
    %799 = vmatmul.bf16.gmra.mxu0 %v655
    %v800 = vpop.f32.mrf.mxu0
    %v801 = vadd.f32 %v575, %v800
    %v802 = vpop.f32.mrf.mxu0
    %v803 = vadd.f32 %v575, %v802
    %804 = vmatmul.bf16.gmra.mxu0 %v656
    %v805 = vpop.f32.mrf.mxu0
    %v806 = vadd.f32 %v575, %v805
    %v807 = vpop.f32.mrf.mxu0
    %v808 = vadd.f32 %v575, %v807
    %809 = vdwg.mxu0
    %v810 = vmax.f32 %v731, 0.0
    %v811 = vmax.f32 %v733, 0.0
    %v812 = vmax.f32 %v736, 0.0
    %v813 = vmax.f32 %v738, 0.0
    %v814 = vmax.f32 %v741, 0.0
    %v815 = vmax.f32 %v743, 0.0
    %v816 = vmax.f32 %v746, 0.0
    %v817 = vmax.f32 %v748, 0.0
    %v818 = vmax.f32 %v751, 0.0
    %v819 = vmax.f32 %v753, 0.0
    %v820 = vmax.f32 %v756, 0.0
    %v821 = vmax.f32 %v758, 0.0
    %v822 = vmax.f32 %v761, 0.0
    %v823 = vmax.f32 %v763, 0.0
    %v824 = vmax.f32 %v766, 0.0
    %v825 = vmax.f32 %v768, 0.0
    %v826 = vmax.f32 %v771, 0.0
    %v827 = vmax.f32 %v773, 0.0
    %v828 = vmax.f32 %v776, 0.0
    %v829 = vmax.f32 %v778, 0.0
    %v830 = vmax.f32 %v781, 0.0
    %v831 = vmax.f32 %v783, 0.0
    %v832 = vmax.f32 %v786, 0.0
    %v833 = vmax.f32 %v788, 0.0
    %v834 = vmax.f32 %v791, 0.0
    %v835 = vmax.f32 %v793, 0.0
    %v836 = vmax.f32 %v796, 0.0
    %v837 = vmax.f32 %v798, 0.0
    %v838 = vmax.f32 %v801, 0.0
    %v839 = vmax.f32 %v803, 0.0
    %v840 = vmax.f32 %v806, 0.0
    %v841 = vmax.f32 %v808, 0.0
    %v842 = vld [vmem:[#allocation4] sm:$0x1]
    %v843 = vadd.f32 %v810, %v811
    %v844 = vadd.f32 %v843, %v812
    %v845 = vadd.f32 %v844, %v813
    %v846 = vadd.f32 %v845, %v814
    %v847 = vadd.f32 %v846, %v815
    %v848 = vadd.f32 %v847, %v816
    %v849 = vadd.f32 %v848, %v817
    %v850 = vadd.f32 %v849, %v818
    %v851 = vadd.f32 %v850, %v819
    %v852 = vadd.f32 %v851, %v820
    %v853 = vadd.f32 %v852, %v821
    %v854 = vadd.f32 %v853, %v822
    %v855 = vadd.f32 %v854, %v823
    %v856 = vadd.f32 %v855, %v824
    %v857 = vadd.f32 %v856, %v825
    %v858 = vadd.f32 %v857, %v826
    %v859 = vadd.f32 %v858, %v827
    %v860 = vadd.f32 %v859, %v828
    %v861 = vadd.f32 %v860, %v829
    %v862 = vadd.f32 %v861, %v830
    %v863 = vadd.f32 %v862, %v831
    %v864 = vadd.f32 %v863, %v832
    %v865 = vadd.f32 %v864, %v833
    %v866 = vadd.f32 %v865, %v834
    %v867 = vadd.f32 %v866, %v835
    %v868 = vadd.f32 %v867, %v836
    %v869 = vadd.f32 %v868, %v837
    %v870 = vadd.f32 %v869, %v838
    %v871 = vadd.f32 %v870, %v839
    %v872 = vadd.f32 %v871, %v840
    %v873 = vadd.f32 %v872, %v841
    %v874 = vrot.slane %v873, 4
    %v875 = vadd.f32 %v873, %v874
    %v876 = vrot.slane %v875, 2
    %v877 = vadd.f32 %v875, %v876
    %v878 = vrot.slane %v877, 1
    %v879 = vadd.f32 %v877, %v878
    %v880 = vadd.f32 %v842, %v879
    %881 = vst [vmem:[#allocation4] sm:$0x1] %v880
    // Predicated region
    $region66: #{tpu_custom_call.1} parent=1 // pred_check
      %p882 = pneg %p125
    $region67: #{tpu_custom_call.1} parent=1 // pred_check_branch
      %884 = sbr.rel (%p882) target = $region69
    $region68: #{tpu_custom_call.1} parent=1 // pred_region
      %v885 = vld [vmem:[#allocation4] sm:$0x1]
      %v886 = vmul.f32 %v885, 0.00390625
      %v887 = vld [vmem:[#allocation13] sm:$0xff]
      %v888 = vld [vmem:[#allocation13 + $0x8] sm:$0xff]
      %v889 = vld [vmem:[#allocation13 + $0x10] sm:$0xff]
      %v890 = vld [vmem:[#allocation13 + $0x18] sm:$0xff]
      %v891 = vld [vmem:[#allocation13 + $0x20] sm:$0xff]
      %v892 = vld [vmem:[#allocation13 + $0x28] sm:$0xff]
      %v893 = vld [vmem:[#allocation13 + $0x30] sm:$0xff]
      %v894 = vld [vmem:[#allocation13 + $0x38] sm:$0xff]
      %v895 = vld [vmem:[#allocation13 + $0x40] sm:$0xff]
      %v896 = vld [vmem:[#allocation13 + $0x48] sm:$0xff]
      %v897 = vld [vmem:[#allocation13 + $0x50] sm:$0xff]
      %v898 = vld [vmem:[#allocation13 + $0x58] sm:$0xff]
      %v899 = vld [vmem:[#allocation13 + $0x60] sm:$0xff]
      %v900 = vld [vmem:[#allocation13 + $0x68] sm:$0xff]
      %v901 = vld [vmem:[#allocation13 + $0x70] sm:$0xff]
      %v902 = vld [vmem:[#allocation13 + $0x78] sm:$0xff]
      %v903 = vld [vmem:[%s6] sm:$0x1]
      %904 = vmatpush.msra.mxu0 %v902
      %905 = vmatpush.msra.mxu0 %v901
      %906 = vmatpush.msra.mxu0 %v900
      %907 = vmatpush.msra.mxu0 %v899
      %908 = vmatpush.msra.mxu0 %v898
      %909 = vmatpush.msra.mxu0 %v897
      %910 = vmatpush.msra.mxu0 %v896
      %911 = vmatpush.msra.mxu0 %v895
      %912 = vmatpush.msra.mxu0 %v894
      %913 = vmatpush.msra.mxu0 %v893
      %914 = vmatpush.msra.mxu0 %v892
      %915 = vmatpush.msra.mxu0 %v891
      %916 = vmatpush.msra.mxu0 %v890
      %917 = vmatpush.msra.mxu0 %v889
      %918 = vmatpush.msra.mxu0 %v888
      %919 = vmatpush.msra.mxu0 %v887
      %920 = vmatmul.f32.gmra.mxu0 %v886
      %v921 = vpop.f32.mrf.mxu0
      %v922 = vadd.f32 %v903, %v921
      %923 = vdwg.mxu0
      %v924 = vmax.f32 %v922, 0.0
      %v925 = vld [vmem:[#allocation14] sm:$0xff]
      %v926 = vld [vmem:[#allocation14 + $0x8] sm:$0xff]
      %v927 = vld [vmem:[#allocation14 + $0x10] sm:$0xff]
      %v928 = vld [vmem:[#allocation14 + $0x18] sm:$0xff]
      %v929 = vld [vmem:[#allocation14 + $0x20] sm:$0xff]
      %v930 = vld [vmem:[#allocation14 + $0x28] sm:$0xff]
      %v931 = vld [vmem:[#allocation14 + $0x30] sm:$0xff]
      %v932 = vld [vmem:[#allocation14 + $0x38] sm:$0xff]
      %v933 = vld [vmem:[#allocation14 + $0x40] sm:$0xff]
      %v934 = vld [vmem:[#allocation14 + $0x48] sm:$0xff]
      %v935 = vld [vmem:[#allocation14 + $0x50] sm:$0xff]
      %v936 = vld [vmem:[#allocation14 + $0x58] sm:$0xff]
      %v937 = vld [vmem:[#allocation14 + $0x60] sm:$0xff]
      %v938 = vld [vmem:[#allocation14 + $0x68] sm:$0xff]
      %v939 = vld [vmem:[#allocation14 + $0x70] sm:$0xff]
      %v940 = vld [vmem:[#allocation14 + $0x78] sm:$0xff]
      %v941 = vld [vmem:[%s8] sm:$0x1]
      %942 = vmatpush.msra.mxu0 %v940
      %943 = vmatpush.msra.mxu0 %v939
      %944 = vmatpush.msra.mxu0 %v938
      %945 = vmatpush.msra.mxu0 %v937
      %946 = vmatpush.msra.mxu0 %v936
      %947 = vmatpush.msra.mxu0 %v935
      %948 = vmatpush.msra.mxu0 %v934
      %949 = vmatpush.msra.mxu0 %v933
      %950 = vmatpush.msra.mxu0 %v932
      %951 = vmatpush.msra.mxu0 %v931
      %952 = vmatpush.msra.mxu0 %v930
      %953 = vmatpush.msra.mxu0 %v929
      %954 = vmatpush.msra.mxu0 %v928
      %955 = vmatpush.msra.mxu0 %v927
      %956 = vmatpush.msra.mxu0 %v926
      %957 = vmatpush.msra.mxu0 %v925
      %958 = vmatmul.f32.gmra.mxu0 %v924
      %v959 = vpop.f32.mrf.mxu0
      %v960 = vadd.f32 %v941, %v959
      %961 = vdwg.mxu0
      %962 = vst [vmem:[#allocation16] sm:$0x1] %v960
    $region69: #{tpu_custom_call.1} parent=1 // pred_fallthru
      _
    // Predicated region
    $region70: #{tpu_custom_call.1} parent=1 // pred_check
      _
    $region71: #{tpu_custom_call.1} parent=1 // pred_check_branch
      %964 = sbr.rel (0) target = $region73
    $region72: #{tpu_custom_call.1} parent=1 // pred_region
      %966 = vsyncadd [#allocation7], 0
      %s968 = sshll.u32 [#allocation16], 4
      %s969 = int_to_ptr.vmem [resolvable:$true] %s968
      %s970 = sshll.u32 %s9, 4
      %s971 = int_to_ptr.hbm [resolvable:$true] %s970
      %973 = dma.vmem_to_hbm [thread:$0]  %s969, 16, %s971, [#allocation7]
    $region73: #{tpu_custom_call.1} parent=1 // pred_fallthru
      _
    // Predicated region
    $region74: #{tpu_custom_call.1} parent=1 // pred_check
      _
    $region75: #{tpu_custom_call.1} parent=1 // pred_check_branch
      %975 = sbr.rel (0) target = $region77
    $region76: #{tpu_custom_call.1} parent=1 // pred_region
      %977 = dma.done [#allocation7], 16
    $region77: #{tpu_custom_call.1} parent=1 // pred_fallthru
      _
    %978 = vsyncpa [#allocation6], 1
    %979 = vsyncpa [#allocation9], 1
    %980 = vsyncpa [#allocation12], 1
    %981 = vsyncpa [#allocation15], 1
    %982 = vsyncpa [#allocation7], 1

</llo_original>
